<compile_context>
chip_gen: v5e
topology: v5e:2x2
jax: 0.10.0
libtpu: 0.0.40
codegen_flags: <defaults>
</compile_context>

<pallas_src>
import functools
import math

import jax
import jax.numpy as jnp
from jax import lax
from jax.experimental import pallas as pl
from jax.experimental.pallas import tpu as pltpu

EPS = 1e-6


def _round_up(x, m):
    return (x + m - 1) // m * m


def _hw_plan():
    """Return (tiling budget bytes, vmem_limit_bytes, two_core_hint) per generation."""
    cap = None
    try:
        cap = int(pltpu.get_tpu_info().vmem_capacity_bytes)
    except Exception:
        cap = None
    if cap is not None and cap >= (100 << 20):        # v5e / v6e: 128 MiB VMEM, 1 TC
        return 80 << 20, 100 << 20, False
    if cap is not None:                               # v7x-class: 64 MiB / TC, 2 TCs
        return 36 << 20, 48 << 20, True
    return 36 << 20, 48 << 20, False                  # unknown: stay v7x-safe


def _plan_tiles(B, C, F, budget, two_core):
    """Pick (tb, tc, Cp, weight_resident) under the per-generation VMEM budget."""
    tb = min(_round_up(B, 8), 256)
    tc = min(_round_up(C, 128), 2048)

    def need(tb_, tc_, wt_cols):
        return (2 * tb_ * F * 2            # x bf16 (double-buffered)
                + 2 * F * wt_cols * 2      # W^T bf16
                + 2 * tb_ * tc_ * 4        # cos f32 output
                + 2 * tb_ * 128 * 4        # b_row output (lane-padded)
                + 2 * tb_ * 128 * 4        # inv|x| input (lane-padded)
                + 2 * 8 * tc_ * 4          # inv|w| input (sublane-padded)
                + tb_ * 128 * 4)           # accumulator scratch

    while need(tb, tc, tc) > budget and tc > 128:
        tc -= 128
    while need(tb, tc, tc) > budget and tb > 8:
        tb -= 8

    # Give both TensorCores work on 2-TC chips (batch axis is the "parallel" one).
    if two_core and _round_up(B, tb) // tb < 2 and B >= 16:
        tb = _round_up((B + 1) // 2, 8)

    Cp = _round_up(C, tc)
    wt_resident = need(tb, tc, Cp) <= budget          # full bf16 W^T stays in VMEM
    return tb, tc, Cp, wt_resident


def _cos_brow_kernel(x_ref, wt_ref, ixn_ref, iwn_ref, cos_ref, brow_ref, acc_ref,
                     *, s_init, tc, wt_resident):
    """cos tile + accumulation of sum_c exp(s_init * cos) across the class grid axis."""
    j = pl.program_id(1)
    if wt_resident:
        wt = wt_ref[:, pl.ds(pl.multiple_of(j * tc, 128), tc)]
    else:
        wt = wt_ref[...]

    # bf16 MXU feed, f32 accumulate; normalization applied after the matmul with the
    # precomputed f32 inverse norms (no per-tile norm recompute, no casts).
    cos = jnp.dot(x_ref[...], wt, preferred_element_type=jnp.float32)
    cos = cos * ixn_ref[...] * iwn_ref[...]           # (tb,1) * (1,tc) broadcasts
    cos_ref[...] = cos

    @pl.when(j == 0)
    def _():
        acc_ref[...] = jnp.zeros_like(acc_ref)

    # Sum over ALL classes in this tile; target / padded-class terms are removed
    # exactly in the cheap (B,)-sized JAX glue outside the kernel.
    acc_ref[...] = acc_ref[...] + jnp.sum(jnp.exp(s_init * cos), axis=1, keepdims=True)

    @pl.when(j == pl.num_programs(1) - 1)
    def _():
        brow_ref[...] = acc_ref[...]


def _cos_kernel(x_ref, wt_ref, ixn_ref, iwn_ref, cos_ref, *, tc, wt_resident):
    """Projection-only path (target=None): no exp / reduce / b_row output."""
    j = pl.program_id(1)
    if wt_resident:
        wt = wt_ref[:, pl.ds(pl.multiple_of(j * tc, 128), tc)]
    else:
        wt = wt_ref[...]
    cos = jnp.dot(x_ref[...], wt, preferred_element_type=jnp.float32)
    cos_ref[...] = cos * ixn_ref[...] * iwn_ref[...]


def adacos_forward(x, weight, target=None, *, training=True, s_prev=None, eps=EPS,
                   mxu_dtype=jnp.bfloat16):
    """Functional AdaCos forward. Returns (logits_or_cos, s)."""
    B, F_in = x.shape
    C, F_w = weight.shape
    assert F_in == F_w
    s_init = float(s_prev) if s_prev is not None else math.sqrt(2.0) * math.log(C - 1)

    budget, vmem_limit, two_core = _hw_plan()
    tb, tc, Cp, wt_resident = _plan_tiles(B, C, F_in, budget, two_core)
    Bp = _round_up(B, tb)
    grid = (Bp // tb, Cp // tc)

    # Precompute f32 inverse norms once (F.normalize eps: 1/max(||v||,1e-12)).
    x_f32 = x.astype(jnp.float32)
    w_f32 = weight.astype(jnp.float32)
    inv_xn = lax.rsqrt(jnp.maximum(jnp.sum(x_f32 * x_f32, axis=1, keepdims=True), 1e-24))
    inv_wn = lax.rsqrt(jnp.maximum(jnp.sum(w_f32 * w_f32, axis=1, keepdims=True), 1e-24)).T

    # bf16 feed, cast BEFORE the transpose/pad (halves prologue bytes moved).
    # TODO(synk): cache the padded bf16 W^T / inv_wn across calls when weight is static.
    xp = jnp.pad(x.astype(mxu_dtype), ((0, Bp - B), (0, 0)))
    wtp = jnp.pad(weight.astype(mxu_dtype).T, ((0, 0), (0, Cp - C)))
    ixn = jnp.pad(inv_xn, ((0, Bp - B), (0, 0)))
    # Padded classes: zero weight columns AND zero inv-norm -> cos == 0 exactly, so
    # each padded column contributes exp(0)=1 to b_row (subtracted below as Cp-C).
    iwn = jnp.pad(inv_wn, ((0, 0), (0, Cp - C)))

    wt_spec = (pl.BlockSpec((F_in, Cp), lambda i, j: (0, 0)) if wt_resident
               else pl.BlockSpec((F_in, tc), lambda i, j: (0, j)))
    in_specs = [
        pl.BlockSpec((tb, F_in), lambda i, j: (i, 0)),
        wt_spec,
        pl.BlockSpec((tb, 1), lambda i, j: (i, 0)),
        pl.BlockSpec((1, tc), lambda i, j: (0, j)),
    ]
    cos_spec = pl.BlockSpec((tb, tc), lambda i, j: (i, j))

    if target is None:
        cos_p = pl.pallas_call(
            functools.partial(_cos_kernel, tc=tc, wt_resident=wt_resident),
            out_shape=jax.ShapeDtypeStruct((Bp, Cp), jnp.float32),
            grid_spec=pltpu.PrefetchScalarGridSpec(
                num_scalar_prefetch=0, grid=grid,
                in_specs=in_specs, out_specs=cos_spec),
            compiler_params=pltpu.CompilerParams(
                dimension_semantics=("parallel", "parallel"),
                vmem_limit_bytes=vmem_limit),
        )(xp, wtp, ixn, iwn)
        return cos_p[:B, :C], jnp.float32(s_init)

    cos_p, brow_p = pl.pallas_call(
        functools.partial(_cos_brow_kernel, s_init=s_init, tc=tc,
                          wt_resident=wt_resident),
        out_shape=(jax.ShapeDtypeStruct((Bp, Cp), jnp.float32),
                   jax.ShapeDtypeStruct((Bp, 128), jnp.float32)),
        grid_spec=pltpu.PrefetchScalarGridSpec(
            num_scalar_prefetch=0, grid=grid,
            in_specs=in_specs,
            out_specs=(cos_spec, pl.BlockSpec((tb, 128), lambda i, j: (i, 0))),
            scratch_shapes=[pltpu.VMEM((tb, 128), jnp.float32)]),
        compiler_params=pltpu.CompilerParams(
            dimension_semantics=("parallel", "arbitrary"),
            vmem_limit_bytes=vmem_limit),
    )(xp, wtp, ixn, iwn)

    cos_theta = cos_p[:B, :C]

    if training:
        idx = jnp.arange(B)
        cos_tgt = cos_theta[idx, target]
        # Kernel summed exp(s0*cos) over ALL Cp classes; remove the Cp-C padded columns
        # (each exactly exp(0)=1) and the target term to get the non-target sum.
        b_row = brow_p[:B, 0] - jnp.float32(Cp - C) - jnp.exp(s_init * cos_tgt)
        b_avg = jnp.mean(b_row)

        theta_tgt = jnp.arccos(jnp.clip(cos_tgt, -1.0 + eps, 1.0 - eps))
        # torch.median on an even-length vector returns the LOWER middle element.
        theta_median = jnp.sort(theta_tgt)[(B - 1) // 2]
        theta_median = jnp.minimum(jnp.float32(math.pi / 4.0), theta_median)
        s = jnp.log(b_avg) / jnp.cos(theta_median)
    else:
        s = jnp.float32(s_init)

    # Scalar broadcast multiply — XLA fuses it; no second HBM round trip needed.
    logits = s * cos_theta
    return logits, s


if __name__ == "__main__":
    key = jax.random.PRNGKey(0)
    kx, kw, kt = jax.random.split(key, 3)

    B, F_IN, C = 8, 32, 16  # batch, in_features, out_features
    x = jax.random.normal(kx, (B, F_IN), dtype=jnp.float32)

    # deterministic xavier_uniform_-style weight (out_features, in_features)
    bound = math.sqrt(6.0 / (F_IN + C))
    weight = jax.random.uniform(kw, (C, F_IN), jnp.float32, -bound, bound)

    target = jax.random.randint(kt, (B,), 0, C)

    # training path with target (dynamical s)
    logits, s_new = adacos_forward(x, weight, target, training=True)
    jax.block_until_ready(logits)

    # eval path with target (fixed s)
    logits_eval, _ = adacos_forward(x, weight, target, training=False)
    jax.block_until_ready(logits_eval)

    # target=None path (projection on centroids)
    cos_only, _ = adacos_forward(x, weight, None)
    jax.block_until_ready(cos_only)

    print("KERNEL_OK")
</pallas_src>

<mosaic_0001>
module attributes {stable_mosaic.version = 11 : i64} {
  func.func @_cos_brow_kernel(%arg0: i32, %arg1: i32, %arg2: memref<8x32xbf16, #tpu.memory_space<vmem>>, %arg3: memref<32x128xbf16, #tpu.memory_space<vmem>>, %arg4: memref<8x1xf32, #tpu.memory_space<vmem>>, %arg5: memref<1x128xf32, #tpu.memory_space<vmem>>, %arg6: memref<8x128xf32, #tpu.memory_space<vmem>>, %arg7: memref<8x128xf32, #tpu.memory_space<vmem>>, %arg8: memref<8x128xf32, #tpu.memory_space<vmem>>) attributes {dimension_semantics = [#tpu.dimension_semantics<parallel>, #tpu.dimension_semantics<arbitrary>], iteration_bounds = array<i64: 1, 1>, scalar_prefetch = 0 : i64, scratch_operands = 1 : i64, tpu.core_type = #tpu.core_type<tc>, window_params = [{transform_indices = @transform_0, window_bounds = array<i64: 8, 32>}, {pipeline_mode = #tpu.pipeline_mode<synchronous>, transform_indices = @transform_1, window_bounds = array<i64: 32, 128>}, {transform_indices = @transform_2, window_bounds = array<i64: 8, 1>}, {transform_indices = @transform_3, window_bounds = array<i64: 1, 128>}, {transform_indices = @transform_4, window_bounds = array<i64: 8, 128>}, {transform_indices = @transform_5, window_bounds = array<i64: 8, 128>}]} {
    %c128_i32 = arith.constant 128 : i32
    %0 = arith.muli %arg1, %c128_i32 : i32
    %1 = tpu.assume_multiple %0, 128 : i32
    %c0 = arith.constant 0 : index
    %2 = arith.index_cast %1 : i32 to index
    %3 = vector.load %arg3[%c0, %2] : memref<32x128xbf16, #tpu.memory_space<vmem>>, vector<32x128xbf16>
    %c0_0 = arith.constant 0 : index
    %c0_1 = arith.constant 0 : index
    %4 = vector.load %arg2[%c0_0, %c0_1] : memref<8x32xbf16, #tpu.memory_space<vmem>>, vector<8x32xbf16>
    %cst = arith.constant dense<0.000000e+00> : vector<8x128xf32>
    %5 = tpu.matmul %4, %3, %cst {dimension_numbers = #tpu.dot_dimension_numbers<[1], [0], [0], [1], [0, 0, 1, 1], [], []>} : vector<8x32xbf16>, vector<32x128xbf16>, vector<8x128xf32> -> vector<8x128xf32>
    %c0_2 = arith.constant 0 : index
    %c0_3 = arith.constant 0 : index
    %6 = vector.load %arg4[%c0_2, %c0_3] : memref<8x1xf32, #tpu.memory_space<vmem>>, vector<8x1xf32>
    %7 = vector.broadcast %6 : vector<8x1xf32> to vector<8x128xf32>
    %8 = arith.mulf %5, %7 : vector<8x128xf32>
    %c0_4 = arith.constant 0 : index
    %c0_5 = arith.constant 0 : index
    %9 = vector.load %arg5[%c0_4, %c0_5] : memref<1x128xf32, #tpu.memory_space<vmem>>, vector<1x128xf32>
    %10 = vector.broadcast %9 : vector<1x128xf32> to vector<8x128xf32>
    %11 = arith.mulf %8, %10 : vector<8x128xf32>
    %c0_6 = arith.constant 0 : index
    %c0_7 = arith.constant 0 : index
    %12 = vector.load %arg6[%c0_6, %c0_7] : memref<8x128xf32, #tpu.memory_space<vmem>>, vector<8x128xf32>
    tpu.vector_store %arg6[%c0_6, %c0_7], %11 {strides = array<i32>} : memref<8x128xf32, #tpu.memory_space<vmem>>, vector<8x128xf32>,
    %c0_i32 = arith.constant 0 : i32
    %13 = arith.cmpi eq, %arg1, %c0_i32 : i32
    %14 = arith.extui %13 : i1 to i32
    %c0_i32_8 = arith.constant 0 : i32
    %15 = arith.cmpi ne, %14, %c0_i32_8 : i32
    scf.if %15 {
      %cst_17 = arith.constant 0.000000e+00 : f32
      %28 = vector.broadcast %cst_17 : f32 to vector<8x128xf32>
      %c0_18 = arith.constant 0 : index
      %c0_19 = arith.constant 0 : index
      %29 = vector.load %arg8[%c0_18, %c0_19] : memref<8x128xf32, #tpu.memory_space<vmem>>, vector<8x128xf32>
      tpu.vector_store %arg8[%c0_18, %c0_19], %28 {strides = array<i32>} : memref<8x128xf32, #tpu.memory_space<vmem>>, vector<8x128xf32>,
    } else {
    }
    %c0_9 = arith.constant 0 : index
    %c0_10 = arith.constant 0 : index
    %16 = vector.load %arg8[%c0_9, %c0_10] : memref<8x128xf32, #tpu.memory_space<vmem>>, vector<8x128xf32>
    %cst_11 = arith.constant 3.82976127 : f32
    %17 = vector.broadcast %cst_11 : f32 to vector<8x128xf32>
    %18 = arith.mulf %17, %11 : vector<8x128xf32>
    %19 = math.exp %18 : vector<8x128xf32>
    %cst_12 = arith.constant dense<0.000000e+00> : vector<8xf32>
    %20 = vector.multi_reduction <add>, %19, %cst_12 [1] : vector<8x128xf32> to vector<8xf32>
    %21 = vector.shape_cast %20 : vector<8xf32> to vector<8x1xf32>
    %22 = vector.broadcast %21 : vector<8x1xf32> to vector<8x128xf32>
    %23 = arith.addf %16, %22 : vector<8x128xf32>
    %c0_13 = arith.constant 0 : index
    %c0_14 = arith.constant 0 : index
    %24 = vector.load %arg8[%c0_13, %c0_14] : memref<8x128xf32, #tpu.memory_space<vmem>>, vector<8x128xf32>
    tpu.vector_store %arg8[%c0_13, %c0_14], %23 {strides = array<i32>} : memref<8x128xf32, #tpu.memory_space<vmem>>, vector<8x128xf32>,
    %c0_i32_15 = arith.constant 0 : i32
    %25 = arith.cmpi eq, %arg1, %c0_i32_15 : i32
    %26 = arith.extui %25 : i1 to i32
    %c0_i32_16 = arith.constant 0 : i32
    %27 = arith.cmpi ne, %26, %c0_i32_16 : i32
    scf.if %27 {
      %c0_17 = arith.constant 0 : index
      %c0_18 = arith.constant 0 : index
      %28 = vector.load %arg8[%c0_17, %c0_18] : memref<8x128xf32, #tpu.memory_space<vmem>>, vector<8x128xf32>
      %c0_19 = arith.constant 0 : index
      %c0_20 = arith.constant 0 : index
      %29 = vector.load %arg7[%c0_19, %c0_20] : memref<8x128xf32, #tpu.memory_space<vmem>>, vector<8x128xf32>
      tpu.vector_store %arg7[%c0_19, %c0_20], %28 {strides = array<i32>} : memref<8x128xf32, #tpu.memory_space<vmem>>, vector<8x128xf32>,
    } else {
    }
    return
  }
  func.func @transform_0(%arg0: i32, %arg1: i32) -> (i32, i32) {
    %c0_i32 = arith.constant 0 : i32
    %c0_i32_0 = arith.constant 0 : i32
    return %arg0, %c0_i32 : i32, i32
  }
  func.func @transform_1(%arg0: i32, %arg1: i32) -> (i32, i32) {
    %c0_i32 = arith.constant 0 : i32
    %c0_i32_0 = arith.constant 0 : i32
    %c0_i32_1 = arith.constant 0 : i32
    return %c0_i32, %c0_i32_0 : i32, i32
  }
  func.func @transform_2(%arg0: i32, %arg1: i32) -> (i32, i32) {
    %c0_i32 = arith.constant 0 : i32
    %c0_i32_0 = arith.constant 0 : i32
    return %arg0, %c0_i32 : i32, i32
  }
  func.func @transform_3(%arg0: i32, %arg1: i32) -> (i32, i32) {
    %c0_i32 = arith.constant 0 : i32
    %c0_i32_0 = arith.constant 0 : i32
    return %c0_i32, %arg1 : i32, i32
  }
  func.func @transform_4(%arg0: i32, %arg1: i32) -> (i32, i32) {
    %c0_i32 = arith.constant 0 : i32
    return %arg0, %arg1 : i32, i32
  }
  func.func @transform_5(%arg0: i32, %arg1: i32) -> (i32, i32) {
    %c0_i32 = arith.constant 0 : i32
    %c0_i32_0 = arith.constant 0 : i32
    return %arg0, %c0_i32 : i32, i32
  }
}

</mosaic_0001>

<llo_original>
// kernel: tpu_custom_call.1
$region0: #{tpu_custom_call.1}
  #allocation0 [shape = 'u32[]', space=smem, size = 0x4, offset = 0x4, fixed_abs, tag = 'smem constant byte address 0x4 - core index']
  #allocation1 [shape = 'u32[72,128]{1,0:T(1,128)}', space=vmem, size = 0x9000, scoped, tag = 'internal scratch']
  #allocation2 [shape = 'f32[8,128]{1,0:T(8,128)}', space=vmem, size = 0x1000, scoped, tag = 'scratch operand']
  %s0 = inlined_call_operand.vmem [shape: bf16[8,32], index: 0, kind: input, shape index: {}]
  %s1 = inlined_call_operand.hbm [shape: bf16[32,128], index: 1, kind: input, shape index: {}]
  %s2 = inlined_call_operand.vmem [shape: f32[8,1], index: 2, kind: input, shape index: {}]
  %s3 = inlined_call_operand.vmem [shape: f32[1,128], index: 3, kind: input, shape index: {}]
  %s4 = inlined_call_operand.hbm [shape: f32[8,128], index: 4, kind: output, shape index: {0}]
  %s5 = inlined_call_operand.hbm [shape: f32[8,128], index: 5, kind: output, shape index: {1}]
  %6 = xla_tuple %s4, %s5
  %s7 = sld [smem:[#allocation0]]
  $region46: #{tpu_custom_call.1} parent=0
    _
  %s9 = ssub.s32 1, %s7
  %s10 = scalar_select 0, %s9, %s7
  $region1: #{tpu_custom_call.1} parent=0
    #allocation3 [shape = 'u8[8192]{0}', space=vmem, size = 0x2000, scoped, tag = 'input window, operand 1, single buffered']
    #allocation4 [shape = 's32[1]{0}', space=sflag, size = 0x4, scoped, tag = 'scoped memory for tpu_custom_call.1']
    #allocation5 [shape = 's32[1]{0}', space=sflag, size = 0x4, scoped, tag = 'scoped memory for tpu_custom_call.1']
    #allocation6 [shape = 'u8[4096]{0}', space=vmem, size = 0x1000, scoped, tag = 'output window, operand 0, single buffered']
    #allocation7 [shape = 'u8[4096]{0}', space=vmem, size = 0x1000, scoped, tag = 'output window, operand 1, single buffered']
    #allocation8 [shape = 's32[1]{0}', space=sflag, size = 0x4, scoped, tag = 'scoped memory for tpu_custom_call.1']
    %11 = vsyncpa [#allocation4], 0
    %12 = vsyncpa [#allocation5], 0
    %13 = vsyncpa [#allocation8], 0
    // Predicated region
    $region2: #{tpu_custom_call.1} parent=1 // pred_check
      _
    $region3: #{tpu_custom_call.1} parent=1 // pred_check_branch
      %15 = sbr.rel (0) target = $region5
    $region4: #{tpu_custom_call.1} parent=1 // pred_region
      _
    $region5: #{tpu_custom_call.1} parent=1 // pred_fallthru
      _
    // Predicated region
    $region6: #{tpu_custom_call.1} parent=1 // pred_check
      _
    $region7: #{tpu_custom_call.1} parent=1 // pred_check_branch
      %17 = sbr.rel (0) target = $region9
    $region8: #{tpu_custom_call.1} parent=1 // pred_region
      %19 = vsyncadd [#allocation4], 0
      %s20 = sshll.u32 %s1, 4
      %s21 = int_to_ptr.hbm [resolvable:$true] %s20
      %s22 = sshll.u32 [#allocation3], 4
      %s23 = int_to_ptr.vmem [resolvable:$true] %s22
      %28 = dma.hbm_to_vmem [thread:$0]  %s21, 256, %s23, [#allocation4], 64, 64, 4
    $region9: #{tpu_custom_call.1} parent=1 // pred_fallthru
      _
    // Predicated region
    $region10: #{tpu_custom_call.1} parent=1 // pred_check
      _
    $region11: #{tpu_custom_call.1} parent=1 // pred_check_branch
      %30 = sbr.rel (0) target = $region13
    $region12: #{tpu_custom_call.1} parent=1 // pred_region
      _
    $region13: #{tpu_custom_call.1} parent=1 // pred_fallthru
      _
    // Predicated region
    $region14: #{tpu_custom_call.1} parent=1 // pred_check
      _
    $region15: #{tpu_custom_call.1} parent=1 // pred_check_branch
      %32 = sbr.rel (0) target = $region17
    $region16: #{tpu_custom_call.1} parent=1 // pred_region
      _
    $region17: #{tpu_custom_call.1} parent=1 // pred_fallthru
      _
    // Predicated region
    $region18: #{tpu_custom_call.1} parent=1 // pred_check
      _
    $region19: #{tpu_custom_call.1} parent=1 // pred_check_branch
      %34 = sbr.rel (0) target = $region21
    $region20: #{tpu_custom_call.1} parent=1 // pred_region
      %36 = dma.done [#allocation4], 256
    $region21: #{tpu_custom_call.1} parent=1 // pred_fallthru
      _
    %s38 = smul.u32 0, 128
    %s39 = sshra.s32 %s38, 7
    %s40 = sand.u32 %s38, 127
    %s41 = smul.addr %s39, 4
    %s42 = scalar_lea.vmem [#allocation3], %s41
    %v43 = vld [vmem:[%s42] sm:$0xf]
    %v44 = vld [vmem:[%s42 + $0x4] sm:$0xf]
    %v45 = vld [vmem:[%s42 + $0x8] sm:$0xf]
    %v46 = vld [vmem:[%s42 + $0xc] sm:$0xf]
    %v47 = vld [vmem:[%s0] sm:$0xf]
    %v52 = vunpack.c.l.b16 %v43
    %v53 = vunpack.c.l.b16 %v44
    %v54 = vunpack.c.l.b16 %v45
    %v55 = vunpack.c.l.b16 %v46
    %v56 = vpack.c.b16 %v53, %v52
    %v57 = vpack.c.b16 %v55, %v54
    %vm60 = vcmask 261120
    %v62 = vsel %vm60, %v47, 0
    %64 = vmatpush.bf16.msra.mxu0 0
    %65 = vmatpush.bf16.msra.mxu0 0
    %66 = vmatpush.bf16.msra.mxu0 0
    %67 = vmatpush.bf16.msra.mxu0 0
    %68 = vmatpush.bf16.msra.mxu0 0
    %69 = vmatpush.bf16.msra.mxu0 0
    %70 = vmatpush.bf16.msra.mxu0 %v57
    %71 = vmatpush.bf16.msra.mxu0 %v56
    %72 = vmatmul.bf16.gmra.mxu0 %v62
    %v73 = vpop.f32.mrf.mxu0
    %v74 = vadd.f32 0.0, %v73
    %v75 = vpop.f32.mrf.mxu0
    %76 = vdwg.mxu0
    %v77 = vld [vmem:[%s2] sm:$0xff]
    %79 = vset.pattern.permute.xlu0 0
    %80 = vperm.xlu0 %79, %v77
    %v81 = vpop.permute.xlu0 %80
    %v83 = vmul.f32 %v74, %v81
    %v84 = vld [vmem:[%s3] sm:$0x1]
    %v86 = vperm.slane %v84, 0
    %v88 = vmul.f32 %v83, %v86
    %89 = vst [vmem:[#allocation6] sm:$0xff] %v88
    %p90 = scmp.eq.s32.totalorder 0, 0
    // Predicated region
    $region22: #{tpu_custom_call.1} parent=1 // pred_check
      %p91 = pneg %p90
    $region23: #{tpu_custom_call.1} parent=1 // pred_check_branch
      %93 = sbr.rel (%p91) target = $region25
    $region24: #{tpu_custom_call.1} parent=1 // pred_region
      %94 = vst [vmem:[#allocation2] sm:$0xff] 0.0
    $region25: #{tpu_custom_call.1} parent=1 // pred_fallthru
      _
    %v95 = vld [vmem:[#allocation2] sm:$0xff]
    %v96 = vmul.f32 %v88, 3.8297613
    %v97 = vmul.f32 %v96, 1.442695
    %v98 = vpow.pop %v97
    %99 = vadd.xlane.f32.xlu0 %v98
    %v100 = vpop.xlane.xlu0 %99
    %v101 = vadd.f32 %v95, %v100
    %102 = vst [vmem:[#allocation2] sm:$0xff] %v101
    // Predicated region
    $region26: #{tpu_custom_call.1} parent=1 // pred_check
      %p103 = pneg %p90
    $region27: #{tpu_custom_call.1} parent=1 // pred_check_branch
      %105 = sbr.rel (%p103) target = $region29
    $region28: #{tpu_custom_call.1} parent=1 // pred_region
      %v106 = vld [vmem:[#allocation2] sm:$0xff]
      %107 = vst [vmem:[#allocation7] sm:$0xff] %v106
    $region29: #{tpu_custom_call.1} parent=1 // pred_fallthru
      _
    // Predicated region
    $region30: #{tpu_custom_call.1} parent=1 // pred_check
      _
    $region31: #{tpu_custom_call.1} parent=1 // pred_check_branch
      %109 = sbr.rel (0) target = $region33
    $region32: #{tpu_custom_call.1} parent=1 // pred_region
      %111 = vsyncadd [#allocation5], 0
      %s113 = sshll.u32 [#allocation6], 4
      %s114 = int_to_ptr.vmem [resolvable:$true] %s113
      %s115 = sshll.u32 %s4, 4
      %s116 = int_to_ptr.hbm [resolvable:$true] %s115
      %118 = dma.vmem_to_hbm [thread:$0]  %s114, 128, %s116, [#allocation5]
    $region33: #{tpu_custom_call.1} parent=1 // pred_fallthru
      _
    // Predicated region
    $region34: #{tpu_custom_call.1} parent=1 // pred_check
      _
    $region35: #{tpu_custom_call.1} parent=1 // pred_check_branch
      %120 = sbr.rel (0) target = $region37
    $region36: #{tpu_custom_call.1} parent=1 // pred_region
      %122 = vsyncadd [#allocation8], 0
      %s124 = sshll.u32 [#allocation7], 4
      %s125 = int_to_ptr.vmem [resolvable:$true] %s124
      %s126 = sshll.u32 %s5, 4
      %s127 = int_to_ptr.hbm [resolvable:$true] %s126
      %129 = dma.vmem_to_hbm [thread:$0]  %s125, 128, %s127, [#allocation8]
    $region37: #{tpu_custom_call.1} parent=1 // pred_fallthru
      _
    // Predicated region
    $region38: #{tpu_custom_call.1} parent=1 // pred_check
      _
    $region39: #{tpu_custom_call.1} parent=1 // pred_check_branch
      %131 = sbr.rel (0) target = $region41
    $region40: #{tpu_custom_call.1} parent=1 // pred_region
      %133 = dma.done [#allocation5], 128
    $region41: #{tpu_custom_call.1} parent=1 // pred_fallthru
      _
    // Predicated region
    $region42: #{tpu_custom_call.1} parent=1 // pred_check
      _
    $region43: #{tpu_custom_call.1} parent=1 // pred_check_branch
      %135 = sbr.rel (0) target = $region45
    $region44: #{tpu_custom_call.1} parent=1 // pred_region
      %137 = dma.done [#allocation8], 128
    $region45: #{tpu_custom_call.1} parent=1 // pred_fallthru
      _
    %138 = vsyncpa [#allocation4], 1
    %139 = vsyncpa [#allocation5], 1
    %140 = vsyncpa [#allocation8], 1

</llo_original>
